<compile_context>
chip_gen: v5e
topology: v5e:2x2
jax: 0.10.0
libtpu: 0.0.40
codegen_flags: <defaults>
</compile_context>

<pallas_src>
import functools
import math

import jax
import jax.numpy as jnp
from jax import lax
from jax.experimental import pallas as pl
from jax.experimental.pallas import tpu as pltpu


_LOG_DEN_CLAMP = math.log(1e-7)   # clamp(min=1e-7) on the raw denominator


def _loss_from_centroids(s, t, *, tau, start_idx, norm):
    """Shared fused forward on f32 [n, c] centroids; returns a scalar."""
    n = t.shape[0]

    if norm:
        # F.normalize(x, p=2, dim=1): x / max(||x||_2, 1e-12)
        s = s * lax.rsqrt(jnp.maximum(jnp.sum(s * s, axis=1, keepdims=True),
                                      1e-24))
        t = t * lax.rsqrt(jnp.maximum(jnp.sum(t * t, axis=1, keepdims=True),
                                      1e-24))

    inv_tau = 1.0 / tau
    # One fused matmul: logits[:, :n] = <t_r, s_c>/tau, logits[:, n:] = <t_r, t_c>/tau
    st = jnp.concatenate([s, t], axis=0)                       # [2n, c]
    logits = lax.dot_general(
        t, st, dimension_numbers=(((1,), (1,)), ((), ())),
        preferred_element_type=jnp.float32) * inv_tau           # [n, 2n]

    row = lax.broadcasted_iota(jnp.int32, (n, 2 * n), 0)
    col = lax.broadcasted_iota(jnp.int32, (n, 2 * n), 1)
    row_valid = row >= start_idx
    d = row - start_idx
    # torch.diag(M[start_idx:]) picks element (start_idx + i, i) of the full
    # matrix -> columns (r - start_idx) [st half] and n + (r - start_idx)
    # [tt half] for valid rows r >= start_idx.
    diag_mask = jnp.logical_and(
        jnp.logical_or(col == d, col == d + n), row_valid)

    # Numerically stable exp: shift each row by its max over both halves.
    # The shift cancels in num/den; the 1e-7 clamp is applied in log space
    # on the *raw* (unshifted) denominator, matching the reference exactly.
    m = jnp.max(logits, axis=1, keepdims=True)                  # [n, 1]
    e = jnp.exp(logits - m)                                     # [n, 2n]

    den = jnp.sum(e, axis=1, keepdims=True)                     # [n, 1]
    num = jnp.sum(jnp.where(diag_mask, e, 0.0), axis=1, keepdims=True)

    valid = lax.broadcasted_iota(jnp.int32, (n, 1), 0) >= start_idx

    # log(raw numerator)   = log(num) + m   (guard excluded rows: log(1)=0)
    # log(raw denominator) = max(log(den) + m, log(1e-7))
    log_num = jnp.log(jnp.where(valid, num, 1.0)) + m
    log_den = jnp.maximum(jnp.log(den) + m, _LOG_DEN_CLAMP)

    per_row = -(log_num - log_den)                              # [n, 1]
    return jnp.sum(jnp.where(valid, per_row, 0.0))


def _contrastive_kernel(cs_ref, ct_ref, loss_ref, *, tau, start_idx, norm):
    """Single-pair kernel: full arrays in VMEM, scalar loss out in SMEM."""
    s = cs_ref[...].astype(jnp.float32)
    t = ct_ref[...].astype(jnp.float32)
    loss_ref[0, 0] = _loss_from_centroids(
        s, t, tau=tau, start_idx=start_idx, norm=norm)


def _contrastive_kernel_batched(cs_ref, ct_ref, loss_ref, *, tau, start_idx,
                                norm):
    """Per-grid-step kernel over one (s, t) pair of a batch."""
    s = cs_ref[0].astype(jnp.float32)
    t = ct_ref[0].astype(jnp.float32)
    loss_ref[0, 0] = _loss_from_centroids(
        s, t, tau=tau, start_idx=start_idx, norm=norm)


def contrastive_loss(centroid_s, centroid_t, *, tau=5.0, bg=False, norm=True):
    """JAX/Pallas port of ContrastiveLoss.forward for one pair of [n, C]."""
    # TODO(synk): the unused `bg`/`split` forward arguments of the PyTorch
    # module are ignored (only the constructor's self._bg matters), and the
    # `.to(device)` placement call has no Pallas equivalent.
    cs = jnp.asarray(centroid_s)   # native dtype; kernel upcasts to f32
    ct = jnp.asarray(centroid_t)
    start_idx = 0 if bg else 1

    # TODO(synk): tau/start_idx/norm are compile-time constants here (they
    # are constructor constants in the PyTorch module); pass them via SMEM
    # if they must vary at runtime without recompiling.
    kernel = functools.partial(_contrastive_kernel, tau=float(tau),
                               start_idx=start_idx, norm=bool(norm))

    loss = pl.pallas_call(
        kernel,
        out_shape=jax.ShapeDtypeStruct((1, 1), jnp.float32),
        in_specs=[pl.BlockSpec(memory_space=pltpu.VMEM),   # centroid_s (full)
                  pl.BlockSpec(memory_space=pltpu.VMEM)],  # centroid_t (full)
        out_specs=pl.BlockSpec(memory_space=pltpu.SMEM),   # scalar loss
    )(cs, ct)
    return loss[0, 0]


def contrastive_loss_batched(centroid_s, centroid_t, *, tau=5.0, bg=False,
                             norm=True):
    """Batched variant: [B, n, C] x [B, n, C] -> [B] losses in one launch."""
    cs = jnp.asarray(centroid_s)
    ct = jnp.asarray(centroid_t)
    b, n, c = ct.shape
    start_idx = 0 if bg else 1

    kernel = functools.partial(_contrastive_kernel_batched, tau=float(tau),
                               start_idx=start_idx, norm=bool(norm))

    losses = pl.pallas_call(
        kernel,
        out_shape=jax.ShapeDtypeStruct((b, 1), jnp.float32),
        grid=(b,),
        in_specs=[pl.BlockSpec((1, n, c), lambda i: (i, 0, 0)),
                  pl.BlockSpec((1, n, c), lambda i: (i, 0, 0))],
        out_specs=pl.BlockSpec((1, 1), lambda i: (i, 0),
                               memory_space=pltpu.SMEM),
        compiler_params=pltpu.CompilerParams(
            dimension_semantics=("parallel",)),   # both TCs on v7x
    )(cs, ct)
    return losses[:, 0]


def _reference_loss(centroid_s, centroid_t, *, tau=5.0, bg=False, norm=True):
    """Plain-JAX transcription of the PyTorch forward, for verification."""
    cs = jnp.asarray(centroid_s, dtype=jnp.float32)
    ct = jnp.asarray(centroid_t, dtype=jnp.float32)
    if norm:
        cs = cs / jnp.maximum(jnp.linalg.norm(cs, axis=1, keepdims=True), 1e-12)
        ct = ct / jnp.maximum(jnp.linalg.norm(ct, axis=1, keepdims=True), 1e-12)
    exp_st = jnp.exp(ct @ cs.T / tau)
    exp_tt = jnp.exp(ct @ ct.T / tau)
    start = 0 if bg else 1
    num = jnp.diagonal(exp_st[start:]) + jnp.diagonal(exp_tt[start:])
    den = jnp.maximum(exp_st[start:].sum(axis=1) + exp_tt[start:].sum(axis=1),
                      1e-7)
    return jnp.sum(-jnp.log(num / den))


if __name__ == "__main__":
    key = jax.random.PRNGKey(0)
    ks, kt, kbs, kbt = jax.random.split(key, 4)

    n_class, feat_dim = 4, 32
    tau = 5.0

    centroid_s = jax.random.normal(ks, (n_class, feat_dim), dtype=jnp.float32)
    centroid_t = jax.random.normal(kt, (n_class, feat_dim), dtype=jnp.float32)

    # Default module config: bg=False (drop background row), norm=True.
    loss = jax.block_until_ready(
        contrastive_loss(centroid_s, centroid_t, tau=tau, bg=False, norm=True))
    ref = jax.block_until_ready(
        _reference_loss(centroid_s, centroid_t, tau=tau, bg=False, norm=True))
    assert jnp.isfinite(loss), "loss is not finite"
    assert jnp.allclose(loss, ref, rtol=1e-4, atol=1e-5), (loss, ref)

    # bg=True path (full diagonal).
    loss_bg = jax.block_until_ready(
        contrastive_loss(centroid_s, centroid_t, tau=tau, bg=True, norm=True))
    ref_bg = jax.block_until_ready(
        _reference_loss(centroid_s, centroid_t, tau=tau, bg=True, norm=True))
    assert jnp.isfinite(loss_bg), "bg loss is not finite"
    assert jnp.allclose(loss_bg, ref_bg, rtol=1e-4, atol=1e-5), (loss_bg, ref_bg)

    # Batched path: many (s, t) pairs in one pallas_call.
    B = 8
    batch_s = jax.random.normal(kbs, (B, n_class, feat_dim), dtype=jnp.float32)
    batch_t = jax.random.normal(kbt, (B, n_class, feat_dim), dtype=jnp.float32)
    losses = jax.block_until_ready(
        contrastive_loss_batched(batch_s, batch_t, tau=tau, bg=False, norm=True))
    refs = jax.block_until_ready(
        jax.vmap(lambda a, b: _reference_loss(a, b, tau=tau, bg=False,
                                              norm=True))(batch_s, batch_t))
    assert losses.shape == (B,)
    assert bool(jnp.all(jnp.isfinite(losses))), "batched losses not finite"
    assert jnp.allclose(losses, refs, rtol=1e-4, atol=1e-5), (losses, refs)

    print("KERNEL_OK")
</pallas_src>

<mosaic_0001>
module attributes {stable_mosaic.version = 11 : i64} {
  func.func @_contrastive_kernel(%arg0: memref<4x32xf32, #tpu.memory_space<vmem>>, %arg1: memref<4x32xf32, #tpu.memory_space<vmem>>, %arg2: memref<1x1xf32, #tpu.memory_space<smem>>) attributes {dimension_semantics = [], scalar_prefetch = 0 : i64, scratch_operands = 0 : i64, tpu.core_type = #tpu.core_type<tc>} {
    %c0 = arith.constant 0 : index
    %c0_0 = arith.constant 0 : index
    %0 = vector.load %arg0[%c0, %c0_0] : memref<4x32xf32, #tpu.memory_space<vmem>>, vector<4x32xf32>
    %c0_1 = arith.constant 0 : index
    %c0_2 = arith.constant 0 : index
    %1 = vector.load %arg1[%c0_1, %c0_2] : memref<4x32xf32, #tpu.memory_space<vmem>>, vector<4x32xf32>
    %2 = arith.mulf %0, %0 : vector<4x32xf32>
    %cst = arith.constant dense<0.000000e+00> : vector<4xf32>
    %3 = vector.multi_reduction <add>, %2, %cst [1] : vector<4x32xf32> to vector<4xf32>
    %4 = vector.shape_cast %3 : vector<4xf32> to vector<4x1xf32>
    %cst_3 = arith.constant 1.000000e-24 : f32
    %5 = vector.broadcast %cst_3 : f32 to vector<4x1xf32>
    %6 = arith.maximumf %4, %5 : vector<4x1xf32>
    %7 = math.rsqrt %6 : vector<4x1xf32>
    %8 = vector.broadcast %7 : vector<4x1xf32> to vector<4x32xf32>
    %9 = arith.mulf %0, %8 : vector<4x32xf32>
    %10 = arith.mulf %1, %1 : vector<4x32xf32>
    %cst_4 = arith.constant dense<0.000000e+00> : vector<4xf32>
    %11 = vector.multi_reduction <add>, %10, %cst_4 [1] : vector<4x32xf32> to vector<4xf32>
    %12 = vector.shape_cast %11 : vector<4xf32> to vector<4x1xf32>
    %cst_5 = arith.constant 1.000000e-24 : f32
    %13 = vector.broadcast %cst_5 : f32 to vector<4x1xf32>
    %14 = arith.maximumf %12, %13 : vector<4x1xf32>
    %15 = math.rsqrt %14 : vector<4x1xf32>
    %16 = vector.broadcast %15 : vector<4x1xf32> to vector<4x32xf32>
    %17 = arith.mulf %1, %16 : vector<4x32xf32>
    %18 = tpu.concatenate %9, %17 in 0 : vector<4x32xf32>, vector<4x32xf32> -> vector<8x32xf32>
    %cst_6 = arith.constant dense<0.000000e+00> : vector<4x8xf32>
    %19 = tpu.matmul %17, %18, %cst_6 {dimension_numbers = #tpu.dot_dimension_numbers<[1], [1], [0], [0], [0, 0, 1, 0], [], []>} : vector<4x32xf32>, vector<8x32xf32>, vector<4x8xf32> -> vector<4x8xf32>
    %cst_7 = arith.constant 2.000000e-01 : f32
    %20 = vector.broadcast %cst_7 : f32 to vector<4x8xf32>
    %21 = arith.mulf %19, %20 : vector<4x8xf32>
    %22 = tpu.iota {dimensions = array<i32: 0>} : vector<4x8xi32>
    %23 = tpu.iota {dimensions = array<i32: 1>} : vector<4x8xi32>
    %c1_i32 = arith.constant 1 : i32
    %24 = vector.broadcast %c1_i32 : i32 to vector<4x8xi32>
    %25 = arith.cmpi sge, %22, %24 : vector<4x8xi32>
    %c1_i32_8 = arith.constant 1 : i32
    %26 = vector.broadcast %c1_i32_8 : i32 to vector<4x8xi32>
    %27 = arith.subi %22, %26 : vector<4x8xi32>
    %28 = arith.cmpi eq, %23, %27 : vector<4x8xi32>
    %c4_i32 = arith.constant 4 : i32
    %29 = vector.broadcast %c4_i32 : i32 to vector<4x8xi32>
    %30 = arith.addi %27, %29 : vector<4x8xi32>
    %31 = arith.cmpi eq, %23, %30 : vector<4x8xi32>
    %32 = arith.ori %28, %31 : vector<4x8xi1>
    %33 = arith.andi %32, %25 : vector<4x8xi1>
    %cst_9 = arith.constant dense<0xFF800000> : vector<4xf32>
    %34 = vector.multi_reduction <maximumf>, %21, %cst_9 [1] : vector<4x8xf32> to vector<4xf32>
    %35 = vector.shape_cast %34 : vector<4xf32> to vector<4x1xf32>
    %36 = vector.broadcast %35 : vector<4x1xf32> to vector<4x8xf32>
    %37 = arith.subf %21, %36 : vector<4x8xf32>
    %38 = math.exp %37 : vector<4x8xf32>
    %cst_10 = arith.constant dense<0.000000e+00> : vector<4xf32>
    %39 = vector.multi_reduction <add>, %38, %cst_10 [1] : vector<4x8xf32> to vector<4xf32>
    %40 = vector.shape_cast %39 : vector<4xf32> to vector<4x1xf32>
    %cst_11 = arith.constant 0.000000e+00 : f32
    %41 = vector.broadcast %cst_11 : f32 to vector<4x8xf32>
    %42 = arith.select %33, %38, %41 : vector<4x8xi1>, vector<4x8xf32>
    %cst_12 = arith.constant dense<0.000000e+00> : vector<4xf32>
    %43 = vector.multi_reduction <add>, %42, %cst_12 [1] : vector<4x8xf32> to vector<4xf32>
    %44 = vector.shape_cast %43 : vector<4xf32> to vector<4x1xf32>
    %45 = tpu.iota {dimensions = array<i32: 0>} : vector<4x1xi32>
    %c1_i32_13 = arith.constant 1 : i32
    %46 = vector.broadcast %c1_i32_13 : i32 to vector<4x1xi32>
    %47 = arith.cmpi sge, %45, %46 : vector<4x1xi32>
    %cst_14 = arith.constant 1.000000e+00 : f32
    %48 = vector.broadcast %cst_14 : f32 to vector<4x1xf32>
    %49 = arith.select %47, %44, %48 : vector<4x1xi1>, vector<4x1xf32>
    %50 = math.log %49 : vector<4x1xf32>
    %51 = arith.addf %50, %35 : vector<4x1xf32>
    %52 = math.log %40 : vector<4x1xf32>
    %53 = arith.addf %52, %35 : vector<4x1xf32>
    %cst_15 = arith.constant -16.1180954 : f32
    %54 = vector.broadcast %cst_15 : f32 to vector<4x1xf32>
    %55 = arith.maximumf %53, %54 : vector<4x1xf32>
    %56 = arith.subf %51, %55 : vector<4x1xf32>
    %cst_16 = arith.constant 0.000000e+00 : f32
    %57 = vector.broadcast %cst_16 : f32 to vector<4x1xf32>
    %58 = arith.subf %57, %56 : vector<4x1xf32>
    %cst_17 = arith.constant 0.000000e+00 : f32
    %59 = vector.broadcast %cst_17 : f32 to vector<4x1xf32>
    %60 = arith.select %47, %58, %59 : vector<4x1xi1>, vector<4x1xf32>
    %61 = vector.shape_cast %60 : vector<4x1xf32> to vector<1x4x1xf32>
    %cst_18 = arith.constant dense<0.000000e+00> : vector<1xf32>
    %62 = vector.multi_reduction <add>, %61, %cst_18 [1, 2] : vector<1x4x1xf32> to vector<1xf32>
    %63 = vector.shape_cast %62 : vector<1xf32> to vector<1x1x1xf32>
    %64 = vector.extract %63[0, 0, 0] : f32 from vector<1x1x1xf32>
    %c0_19 = arith.constant 0 : index
    %c0_20 = arith.constant 0 : index
    %65 = memref.load %arg2[%c0_19, %c0_20] : memref<1x1xf32, #tpu.memory_space<smem>>
    memref.store %64, %arg2[%c0_19, %c0_20] : memref<1x1xf32, #tpu.memory_space<smem>>
    return
  }
}

</mosaic_0001>

<llo_original>
// kernel: tpu_custom_call.1
$region0: #{tpu_custom_call.1}
  #allocation0 [shape = 'u32[]', space=smem, size = 0x4, offset = 0x4, fixed_abs, tag = 'smem constant byte address 0x4 - core index']
  #allocation1 [shape = 'u32[72,128]{1,0:T(1,128)}', space=vmem, size = 0x9000, scoped, tag = 'internal scratch']
  %s0 = inlined_call_operand.hbm [shape: f32[4,32], index: 0, kind: input, shape index: {}]
  %s1 = inlined_call_operand.hbm [shape: f32[4,32], index: 1, kind: input, shape index: {}]
  %s2 = inlined_call_operand.hbm [shape: f32[1,1], index: 2, kind: output, shape index: {}]
  %s3 = sld [smem:[#allocation0]]
  $region26: #{tpu_custom_call.1} parent=0
    _
  %s5 = ssub.s32 1, %s3
  %s6 = scalar_select 0, %s5, %s3
  $region1: #{tpu_custom_call.1} parent=0
    #allocation2 [shape = 'u8[2048]{0}', space=vmem, size = 0x800, scoped, tag = 'input window, operand 0, single buffered']
    #allocation3 [shape = 's32[1]{0}', space=sflag, size = 0x4, scoped, tag = 'scoped memory for tpu_custom_call.1']
    #allocation4 [shape = 's32[1]{0}', space=sflag, size = 0x4, scoped, tag = 'scoped memory for tpu_custom_call.1']
    #allocation5 [shape = 'u8[2048]{0}', space=vmem, size = 0x800, scoped, tag = 'input window, operand 1, single buffered']
    #allocation6 [shape = 's32[1]{0}', space=sflag, size = 0x4, scoped, tag = 'scoped memory for tpu_custom_call.1']
    #allocation7 [shape = 'u8[512]{0}', space=smem, size = 0x200, scoped, tag = 'output window, operand 0, single buffered']
    %7 = vsyncpa [#allocation3], 0
    %8 = vsyncpa [#allocation6], 0
    %9 = vsyncpa [#allocation4], 0
    // Predicated region
    $region2: #{tpu_custom_call.1} parent=1 // pred_check
      _
    $region3: #{tpu_custom_call.1} parent=1 // pred_check_branch
      %11 = sbr.rel (0) target = $region5
    $region4: #{tpu_custom_call.1} parent=1 // pred_region
      %13 = vsyncadd [#allocation3], 0
      %s15 = sshll.u32 %s0, 4
      %s16 = int_to_ptr.hbm [resolvable:$true] %s15
      %s17 = sshll.u32 [#allocation2], 4
      %s18 = int_to_ptr.vmem [resolvable:$true] %s17
      %20 = dma.hbm_to_vmem [thread:$0]  %s16, 64, %s18, [#allocation3]
    $region5: #{tpu_custom_call.1} parent=1 // pred_fallthru
      _
    // Predicated region
    $region6: #{tpu_custom_call.1} parent=1 // pred_check
      _
    $region7: #{tpu_custom_call.1} parent=1 // pred_check_branch
      %22 = sbr.rel (0) target = $region9
    $region8: #{tpu_custom_call.1} parent=1 // pred_region
      %24 = vsyncadd [#allocation6], 0
      %s26 = sshll.u32 %s1, 4
      %s27 = int_to_ptr.hbm [resolvable:$true] %s26
      %s28 = sshll.u32 [#allocation5], 4
      %s29 = int_to_ptr.vmem [resolvable:$true] %s28
      %31 = dma.hbm_to_vmem [thread:$0]  %s27, 64, %s29, [#allocation6]
    $region9: #{tpu_custom_call.1} parent=1 // pred_fallthru
      _
    // Predicated region
    $region10: #{tpu_custom_call.1} parent=1 // pred_check
      _
    $region11: #{tpu_custom_call.1} parent=1 // pred_check_branch
      %33 = sbr.rel (0) target = $region13
    $region12: #{tpu_custom_call.1} parent=1 // pred_region
      %35 = dma.done [#allocation3], 64
    $region13: #{tpu_custom_call.1} parent=1 // pred_fallthru
      _
    // Predicated region
    $region14: #{tpu_custom_call.1} parent=1 // pred_check
      _
    $region15: #{tpu_custom_call.1} parent=1 // pred_check_branch
      %37 = sbr.rel (0) target = $region17
    $region16: #{tpu_custom_call.1} parent=1 // pred_region
      %39 = dma.done [#allocation6], 64
    $region17: #{tpu_custom_call.1} parent=1 // pred_fallthru
      _
    %v40 = vld [vmem:[#allocation2] sm:$0xf]
    %v41 = vld [vmem:[#allocation5] sm:$0xf]
    %v42 = vmul.f32 %v40, %v40
    %vm43 = vcmask 257024
    %v44 = vsel %vm43, %v42, 0.0
    %45 = vadd.xlane.f32.xlu0 %v44
    %v46 = vpop.xlane.xlu0 %45
    %v47 = vmax.f32 %v46, 1e-24
    %v48 = vrsqrt.pop %v47
    %v49 = vmul.f32 %v48, %v47
    %v50 = vmul.f32 %v49, %v48
    %v51 = vmul.f32 0.5, %v50
    %v52 = vsub.f32 1.5, %v51
    %v53 = vmul.f32 %v48, %v52
    %vm54 = vweird.f32 %v47
    %vm55 = vweird.f32 %v48
    %vm56 = vmor %vm54, %vm55
    %v57 = vsel %vm56, %v48, %v53
    %v58 = vmul.f32 %v40, %v57
    %v59 = vmul.f32 %v41, %v41
    %v60 = vsel %vm43, %v59, 0.0
    %61 = vadd.xlane.f32.xlu0 %v60
    %v62 = vpop.xlane.xlu0 %61
    %v63 = vmax.f32 %v62, 1e-24
    %v64 = vrsqrt.pop %v63
    %v65 = vmul.f32 %v64, %v63
    %v66 = vmul.f32 %v65, %v64
    %v67 = vmul.f32 0.5, %v66
    %v68 = vsub.f32 1.5, %v67
    %v69 = vmul.f32 %v64, %v68
    %vm70 = vweird.f32 %v63
    %vm71 = vweird.f32 %v64
    %vm72 = vmor %vm70, %vm71
    %v73 = vsel %vm72, %v64, %v69
    %v74 = vmul.f32 %v41, %v73
    %v76 = vrot.slane %v74, 4
    %vm78 = vcmask 1043456
    %v79 = vsel %vm78, %v58, %v76
    %vm80 = vcmask 261120
    %v81 = vsel %vm80, %v74, 0
    %v84 = vsel %vm80, %v79, 0
    %86 = vmatpush.xpose.msra.mxu0 0.0
    %87 = vmatpush.xpose.msra.mxu0 0.0
    %88 = vmatpush.xpose.msra.mxu0 0.0
    %89 = vmatpush.xpose.msra.mxu0 0.0
    %90 = vmatpush.xpose.msra.mxu0 0.0
    %91 = vmatpush.xpose.msra.mxu0 0.0
    %92 = vmatpush.xpose.msra.mxu0 0.0
    %93 = vmatpush.xpose.msra.mxu0 0.0
    %94 = vmatpush.xpose.msra.mxu0 0.0
    %95 = vmatpush.xpose.msra.mxu0 0.0
    %96 = vmatpush.xpose.msra.mxu0 0.0
    %97 = vmatpush.xpose.msra.mxu0 0.0
    %98 = vmatpush.xpose.msra.mxu0 0.0
    %99 = vmatpush.xpose.msra.mxu0 0.0
    %100 = vmatpush.xpose.msra.mxu0 0.0
    %101 = vmatpush.xpose.msra.mxu0 %v84
    %102 = vmatmul.f32.gmra.mxu0 %v81
    %v103 = vpop.f32.mrf.mxu0
    %v104 = vadd.f32 0.0, %v103
    %105 = vdwg.mxu0
    %v106 = vmul.f32 %v104, 0.2
    %v107 = vlaneseq
    %v108 = vshrl.u32 %v107, 7
    %v109 = vlaneseq
    %v110 = vand.u32 %v109, 127
    %vm111 = vcmp.ge.s32.totalorder %v108, 1
    %v112 = vsub.s32 %v108, 1
    %vm113 = vcmp.eq.s32.totalorder %v110, %v112
    %v114 = vadd.s32 %v112, 4
    %vm115 = vcmp.eq.s32.totalorder %v110, %v114
    %vm116 = vmor %vm113, %vm115
    %vm117 = vmand %vm116, %vm111
    %vm118 = vcmask 60416
    %v119 = vsel %vm118, %v106, -inf
    %120 = vmax.xlane.f32.xlu0 %v119
    %v121 = vpop.xlane.xlu0 %120
    %v122 = vsub.f32 %v106, %v121
    %v123 = vmul.f32 %v122, 1.442695
    %v124 = vpow.pop %v123
    %v125 = vsel %vm118, %v124, 0.0
    %126 = vadd.xlane.f32.xlu0 %v125
    %v127 = vpop.xlane.xlu0 %126
    %v128 = vsel %vm117, %v124, 0.0
    %v129 = vsel %vm118, %v128, 0.0
    %130 = vadd.xlane.f32.xlu0 %v129
    %v131 = vpop.xlane.xlu0 %130
    %v132 = vsel %vm111, %v131, 1.0
    %v133 = vlog2.pop %v132
    %v134 = vmul.f32 %v133, 0.6931472
    %v135 = vadd.f32 %v134, %v121
    %v136 = vlog2.pop %v127
    %v137 = vmul.f32 %v136, 0.6931472
    %v138 = vadd.f32 %v137, %v121
    %v139 = vmax.f32 %v138, -16.118095
    %v140 = vsub.f32 %v135, %v139
    %v141 = vsub.f32 0.0, %v140
    %v142 = vsel %vm111, %v141, 0.0
    %vm143 = vcmask 3072
    %v144 = vsel %vm143, %v142, 0.0
    %145 = vadd.xlane.f32.xlu0 %v144
    %v146 = vpop.xlane.xlu0 %145
    %v147 = vrot.slane %v146, 4
    %v148 = vadd.f32 %v146, %v147
    %v149 = vrot.slane %v148, 2
    %v150 = vadd.f32 %v148, %v149
    %v151 = vrot.slane %v150, 1
    %v152 = vadd.f32 %v150, %v151
    %s153 = vtos %v152
    %s154 = scalar_lea.smem [#allocation7], 0
    %155 = sst [smem:[%s154]] %s153
    // Predicated region
    $region18: #{tpu_custom_call.1} parent=1 // pred_check
      _
    $region19: #{tpu_custom_call.1} parent=1 // pred_check_branch
      %157 = sbr.rel (0) target = $region21
    $region20: #{tpu_custom_call.1} parent=1 // pred_region
      %159 = vsyncadd [#allocation4], 0
      %s161 = sshll.u32 %s2, 4
      %s162 = int_to_ptr.hbm [resolvable:$true] %s161
      %164 = dma.smem_to_hbm [#allocation7], 16, %s162, [#allocation4]
    $region21: #{tpu_custom_call.1} parent=1 // pred_fallthru
      _
    // Predicated region
    $region22: #{tpu_custom_call.1} parent=1 // pred_check
      _
    $region23: #{tpu_custom_call.1} parent=1 // pred_check_branch
      %166 = sbr.rel (0) target = $region25
    $region24: #{tpu_custom_call.1} parent=1 // pred_region
      %168 = dma.done [#allocation4], 16
    $region25: #{tpu_custom_call.1} parent=1 // pred_fallthru
      _
    %169 = sfence
    %170 = vsyncpa [#allocation3], 1
    %171 = vsyncpa [#allocation6], 1
    %172 = vsyncpa [#allocation4], 1

</llo_original>
